<compile_context>
chip_gen: v6e
topology: v6e:2x2x1
jax: 0.10.0
libtpu: 0.0.40
codegen_flags: <defaults>
</compile_context>

<pallas_src>
import jax
import jax.numpy as jnp
from jax.experimental import pallas as pl
from jax.experimental.pallas import tpu as pltpu


def _gene_importance_kernel(w_ref, x_ref, o_ref):
    # w_ref: (1, TG) precomputed importance row (f32); x_ref / o_ref: (TB, TG) tiles.
    o_ref[...] = (x_ref[...] * w_ref[...]).astype(o_ref.dtype)


def _round_up(n: int, m: int) -> int:
    return ((n + m - 1) // m) * m


def _sublane_quantum(dtype) -> int:
    # Sub-32-bit dtypes pack along sublanes: min tile is (8,128) f32, (16,128) bf16,
    # (32,128) int8/fp8.
    itemsize = jnp.dtype(dtype).itemsize
    return {4: 8, 2: 16, 1: 32}.get(itemsize, 8)


def _default_max_tile_b() -> int:
    # v7x: HBM ~2.3x faster than v6e but per-grid-step overhead unchanged -> bigger
    # per-step tiles. v5e/v6e: (256, 2048) f32 already sits on the roofline plateau.
    try:
        kind = jax.devices()[0].device_kind.lower()
    except Exception:
        return 256
    return 512 if "v7" in kind else 256


def gene_importance_forward(x: jax.Array, global_weights: jax.Array,
                            *, max_tile_b: int | None = None, max_tile_g: int = 2048,
                            donate_x: bool = False) -> jax.Array:
    """x: (B, n_genes); global_weights: (n_genes,). Returns x * softplus(global_weights)."""
    B, G = x.shape
    assert global_weights.shape == (G,)
    if max_tile_b is None:
        max_tile_b = _default_max_tile_b()

    # softplus hoisted out of the per-batch-tile loop: O(G) work done once, in f32
    # (exact, stable logaddexp(0, w)).  Kept f32 so the in-kernel multiply promotes.
    importance = jnp.logaddexp(jnp.float32(0.0),
                               global_weights.astype(jnp.float32)).reshape(1, G)

    # Lane-dense gene tiles: whole G (rounded to 128) if modest, else 2048-wide columns
    # (keep >= 512 so per-row contiguous DMA chunks stay efficient).
    tile_g = min(_round_up(G, 128), max_tile_g)
    quantum = _sublane_quantum(x.dtype)
    tile_b = min(_round_up(B, quantum), _round_up(max_tile_b, quantum))

    n_g = pl.cdiv(G, tile_g)
    n_b = pl.cdiv(B, tile_b)

    if n_g == 1:
        # Single gene column: put batch on the OUTER axis so the outermost parallel
        # axis has extent > 1 and both v7x TensorCores get work.
        grid = (n_b, n_g)
        w_spec = pl.BlockSpec((1, tile_g), lambda i, j: (0, j))
        x_spec = pl.BlockSpec((tile_b, tile_g), lambda i, j: (i, j))
    else:
        # Genes outer, batch inner: the (1, tile_g) weight row's block index is
        # constant across the inner batch loop, so it stays resident per column.
        grid = (n_g, n_b)
        w_spec = pl.BlockSpec((1, tile_g), lambda j, i: (0, j))
        x_spec = pl.BlockSpec((tile_b, tile_g), lambda j, i: (i, j))

    extra = {}
    if donate_x:
        # Alias x to the output (inputs are [importance, x] -> operand index 1).
        # Only use when the caller no longer needs x (e.g. inference).
        extra["input_output_aliases"] = {1: 0}

    return pl.pallas_call(
        _gene_importance_kernel,
        out_shape=jax.ShapeDtypeStruct((B, G), x.dtype),
        grid_spec=pltpu.PrefetchScalarGridSpec(
            num_scalar_prefetch=0,
            grid=grid,
            in_specs=[w_spec, x_spec],
            out_specs=x_spec,
        ),
        compiler_params=pltpu.CompilerParams(
            dimension_semantics=("parallel", "parallel"),
            # 2 big arrays x 2 pipeline buffers x tile_b*tile_g*4B:
            #   256x2048 -> ~8 MiB, 512x2048 -> ~16 MiB; fits v5e/v6e/v7x budgets.
            vmem_limit_bytes=32 * 1024 * 1024,
        ),
        **extra,
    )(importance, x)


if __name__ == "__main__":
    key = jax.random.PRNGKey(0)

    # Small shapes consistent with (batch, n_genes) input.
    B, n_genes = 8, 256
    kx, kw = jax.random.split(key)
    x = jax.random.normal(kx, (B, n_genes), dtype=jnp.float32)
    # nn.Parameter(torch.ones(n_genes)) plus a small perturbation so softplus is exercised.
    global_weights = jnp.ones((n_genes,), dtype=jnp.float32) \
        + 0.1 * jax.random.normal(kw, (n_genes,), dtype=jnp.float32)

    out = jax.block_until_ready(gene_importance_forward(x, global_weights))
    ref = x * jax.nn.softplus(global_weights)[None, :]
    assert out.shape == x.shape and out.dtype == x.dtype
    assert jnp.allclose(out, ref, atol=1e-5, rtol=1e-5)

    # Ragged-shape check: exercises the pl.cdiv / partial-block path (no pad, no slice).
    B2, G2 = 10, 300
    kx2, kw2 = jax.random.split(kw)
    x2 = jax.random.normal(kx2, (B2, G2), dtype=jnp.float32)
    w2 = jnp.ones((G2,), dtype=jnp.float32) \
        + 0.1 * jax.random.normal(kw2, (G2,), dtype=jnp.float32)
    out2 = jax.block_until_ready(gene_importance_forward(x2, w2))
    ref2 = x2 * jax.nn.softplus(w2)[None, :]
    assert out2.shape == x2.shape
    assert jnp.allclose(out2, ref2, atol=1e-5, rtol=1e-5)

    # Multi-gene-tile check (exercises genes-outer / resident-weight grid ordering).
    B3, G3 = 24, 4096
    kx3, kw3 = jax.random.split(kw2)
    x3 = jax.random.normal(kx3, (B3, G3), dtype=jnp.float32)
    w3 = jnp.ones((G3,), dtype=jnp.float32) \
        + 0.1 * jax.random.normal(kw3, (G3,), dtype=jnp.float32)
    out3 = jax.block_until_ready(gene_importance_forward(x3, w3))
    ref3 = x3 * jax.nn.softplus(w3)[None, :]
    assert jnp.allclose(out3, ref3, atol=1e-5, rtol=1e-5)

    print("KERNEL_OK")
</pallas_src>

<mosaic_0001>
module attributes {stable_mosaic.version = 11 : i64} {
  func.func @_gene_importance_kernel(%arg0: i32, %arg1: i32, %arg2: memref<1x256xf32, #tpu.memory_space<vmem>>, %arg3: memref<8x256xf32, #tpu.memory_space<vmem>>, %arg4: memref<8x256xf32, #tpu.memory_space<vmem>>) attributes {dimension_semantics = [#tpu.dimension_semantics<parallel>, #tpu.dimension_semantics<parallel>], iteration_bounds = array<i64: 1, 1>, scalar_prefetch = 0 : i64, scratch_operands = 0 : i64, tpu.core_type = #tpu.core_type<tc>, window_params = [{transform_indices = @transform_0, window_bounds = array<i64: 1, 256>}, {transform_indices = @transform_1, window_bounds = array<i64: 8, 256>}, {transform_indices = @transform_2, window_bounds = array<i64: 8, 256>}]} {
    %c0 = arith.constant 0 : index
    %c0_0 = arith.constant 0 : index
    %0 = vector.load %arg3[%c0, %c0_0] : memref<8x256xf32, #tpu.memory_space<vmem>>, vector<8x256xf32>
    %c0_1 = arith.constant 0 : index
    %c0_2 = arith.constant 0 : index
    %1 = vector.load %arg2[%c0_1, %c0_2] : memref<1x256xf32, #tpu.memory_space<vmem>>, vector<1x256xf32>
    %2 = vector.broadcast %1 : vector<1x256xf32> to vector<8x256xf32>
    %3 = arith.mulf %0, %2 : vector<8x256xf32>
    %c0_3 = arith.constant 0 : index
    %c0_4 = arith.constant 0 : index
    %4 = vector.load %arg4[%c0_3, %c0_4] : memref<8x256xf32, #tpu.memory_space<vmem>>, vector<8x256xf32>
    tpu.vector_store %arg4[%c0_3, %c0_4], %3 {strides = array<i32>} : memref<8x256xf32, #tpu.memory_space<vmem>>, vector<8x256xf32>,
    return
  }
  func.func @transform_0(%arg0: i32, %arg1: i32) -> (i32, i32) {
    %c0_i32 = arith.constant 0 : i32
    %c0_i32_0 = arith.constant 0 : i32
    return %c0_i32, %arg1 : i32, i32
  }
  func.func @transform_1(%arg0: i32, %arg1: i32) -> (i32, i32) {
    %c0_i32 = arith.constant 0 : i32
    return %arg0, %arg1 : i32, i32
  }
  func.func @transform_2(%arg0: i32, %arg1: i32) -> (i32, i32) {
    %c0_i32 = arith.constant 0 : i32
    return %arg0, %arg1 : i32, i32
  }
}

</mosaic_0001>

<llo_original>
// kernel: tpu_custom_call.1
$region0: #{tpu_custom_call.1}
  #allocation0 [shape = 'u32[]', space=smem, size = 0x4, offset = 0x4, fixed_abs, tag = 'smem constant byte address 0x4 - core index']
  #allocation1 [shape = 'u32[144,128]{1,0:T(1,128)}', space=vmem, size = 0x12000, scoped, tag = 'internal scratch']
  %s0 = inlined_call_operand.hbm [shape: f32[1,256], index: 0, kind: input, shape index: {}]
  %s1 = inlined_call_operand.hbm [shape: f32[8,256], index: 1, kind: input, shape index: {}]
  %s2 = inlined_call_operand.hbm [shape: f32[8,256], index: 2, kind: output, shape index: {}]
  %s3 = sld [smem:[#allocation0]]
  $region26: #{tpu_custom_call.1} parent=0
    _
  %s5 = ssub.s32 1, %s3
  %s6 = scalar_select 0, %s5, %s3
  $region1: #{tpu_custom_call.1} parent=0
    #allocation2 [shape = 'u8[1024]{0}', space=vmem, size = 0x400, scoped, tag = 'input window, operand 0, single buffered']
    #allocation3 [shape = 's32[1]{0}', space=sflag, size = 0x4, scoped, tag = 'scoped memory for tpu_custom_call.1']
    #allocation4 [shape = 's32[1]{0}', space=sflag, size = 0x4, scoped, tag = 'scoped memory for tpu_custom_call.1']
    #allocation5 [shape = 'u8[8192]{0}', space=vmem, size = 0x2000, scoped, tag = 'input window, operand 1, single buffered']
    #allocation6 [shape = 's32[1]{0}', space=sflag, size = 0x4, scoped, tag = 'scoped memory for tpu_custom_call.1']
    #allocation7 [shape = 'u8[8192]{0}', space=vmem, size = 0x2000, scoped, tag = 'output window, operand 0, single buffered']
    %7 = vsyncpa [#allocation3], 0
    %8 = vsyncpa [#allocation6], 0
    %9 = vsyncpa [#allocation4], 0
    // Predicated region
    $region2: #{tpu_custom_call.1} parent=1 // pred_check
      _
    $region3: #{tpu_custom_call.1} parent=1 // pred_check_branch
      %11 = sbr.rel (0) target = $region5
    $region4: #{tpu_custom_call.1} parent=1 // pred_region
      %s13 = ssub.s32 32, 32
      %14 = vsyncadd [#allocation3], %s13
      %s16 = sshll.u32 [#allocation2], 4
      %s17 = int_to_ptr.vmem [resolvable:$true] %s16
      %19 = dma.hbm_to_vmem [thread:$0]  %s0, 32, %s17, [#allocation3]
    $region5: #{tpu_custom_call.1} parent=1 // pred_fallthru
      _
    // Predicated region
    $region6: #{tpu_custom_call.1} parent=1 // pred_check
      _
    $region7: #{tpu_custom_call.1} parent=1 // pred_check_branch
      %21 = sbr.rel (0) target = $region9
    $region8: #{tpu_custom_call.1} parent=1 // pred_region
      %s23 = ssub.s32 256, 256
      %24 = vsyncadd [#allocation6], %s23
      %s26 = sshll.u32 [#allocation5], 4
      %s27 = int_to_ptr.vmem [resolvable:$true] %s26
      %29 = dma.hbm_to_vmem [thread:$0]  %s1, 256, %s27, [#allocation6]
    $region9: #{tpu_custom_call.1} parent=1 // pred_fallthru
      _
    // Predicated region
    $region10: #{tpu_custom_call.1} parent=1 // pred_check
      _
    $region11: #{tpu_custom_call.1} parent=1 // pred_check_branch
      %31 = sbr.rel (0) target = $region13
    $region12: #{tpu_custom_call.1} parent=1 // pred_region
      %32 = dma.done [#allocation3], 32
    $region13: #{tpu_custom_call.1} parent=1 // pred_fallthru
      _
    // Predicated region
    $region14: #{tpu_custom_call.1} parent=1 // pred_check
      _
    $region15: #{tpu_custom_call.1} parent=1 // pred_check_branch
      %34 = sbr.rel (0) target = $region17
    $region16: #{tpu_custom_call.1} parent=1 // pred_region
      %35 = dma.done [#allocation6], 256
    $region17: #{tpu_custom_call.1} parent=1 // pred_fallthru
      _
    %v36 = vld [vmem:[#allocation5] sm:$0xff]
    %v37 = vld [vmem:[#allocation5 + $0x8] sm:$0xff]
    %v38 = vld [vmem:[#allocation2] sm:$0x3]
    %v40 = vlaneseq
    %v41 = vshrl.u32 %v40, 7
    %v42 = vsub.s32 0, %v41
    %v43 = vrot.slane %v38, %v42
    %v44 = vlaneseq
    %v45 = vshrl.u32 %v44, 7
    %v46 = vsub.s32 1, %v45
    %v47 = vrot.slane %v38, %v46
    %v50 = vmul.f32 %v36, %v43
    %v51 = vmul.f32 %v37, %v47
    %52 = vst [vmem:[#allocation7] sm:$0xff] %v50
    %53 = vst [vmem:[#allocation7 + $0x8] sm:$0xff] %v51
    // Predicated region
    $region18: #{tpu_custom_call.1} parent=1 // pred_check
      _
    $region19: #{tpu_custom_call.1} parent=1 // pred_check_branch
      %55 = sbr.rel (0) target = $region21
    $region20: #{tpu_custom_call.1} parent=1 // pred_region
      %s57 = ssub.s32 256, 256
      %58 = vsyncadd [#allocation4], %s57
      %s60 = sshll.u32 [#allocation7], 4
      %s61 = int_to_ptr.vmem [resolvable:$true] %s60
      %63 = dma.vmem_to_hbm [thread:$0]  %s61, 256, %s2, [#allocation4]
    $region21: #{tpu_custom_call.1} parent=1 // pred_fallthru
      _
    // Predicated region
    $region22: #{tpu_custom_call.1} parent=1 // pred_check
      _
    $region23: #{tpu_custom_call.1} parent=1 // pred_check_branch
      %65 = sbr.rel (0) target = $region25
    $region24: #{tpu_custom_call.1} parent=1 // pred_region
      %66 = dma.done [#allocation4], 256
    $region25: #{tpu_custom_call.1} parent=1 // pred_fallthru
      _
    %67 = vsyncpa [#allocation3], 1
    %68 = vsyncpa [#allocation6], 1
    %69 = vsyncpa [#allocation4], 1

</llo_original>
